<compile_context>
chip_gen: v7x
topology: tpu7x:2x2x1
jax: 0.10.0
libtpu: 0.0.40
codegen_flags: <defaults>
</compile_context>

<pallas_src>
import functools
import math

import jax
import jax.numpy as jnp
from jax.experimental import pallas as pl
from jax.experimental.pallas import tpu as pltpu


_VMEM_TILE_BUDGET_BYTES = 16 * 1024 * 1024   # per-grid-step tile working set
_VMEM_LIMIT_BYTES = 48 * 1024 * 1024         # < 64 MiB (v7x), < 128 MiB (v5e/v6e)
_MAX_BATCH_BLOCK = 2048


def _choose_batch_block(B, N, F, H):
    """Pick the per-grid-step batch block from a VMEM byte budget."""
    # Per-graph VMEM bytes: double-buffered inputs (x, adj, mask), ~6 live
    # (N, H)-ish f32 intermediates (support, gc, fused, att/hid, y, ...) and a
    # double-buffered output row.
    per_graph = (2 * (N * F + N * N + N) + 6 * N * (H + 1) + 2 * H) * 4
    tb = max(1, _VMEM_TILE_BUDGET_BYTES // per_graph)
    tb = min(tb, _MAX_BATCH_BLOCK)
    if B >= 2:
        # Keep at least two grid blocks so v7x's second TensorCore gets work.
        tb = min(tb, -(-B // 2))
    return max(1, min(tb, B))


def _graph_emb_kernel(x_ref, adj_ref, mask_ref, w_gc_ref, w_fused_ref,
                      b_fused_ref, o_ref, *, use_bf16):
    # x_ref:    (TB*N, F)      adj_ref:  (TB, N, N)     mask_ref: (TB*N, 1)
    # w_gc:     (F, H)         w_fused:  (H, H+1)  [W_ln^T | w_att column]
    # b_fused:  (1, H+1)       o_ref:    (TB, H)
    tb, n, _ = adj_ref.shape
    h = w_gc_ref.shape[1]
    mm_dtype = jnp.bfloat16 if use_bf16 else jnp.float32

    x2d = x_ref[...]                                               # (TB*N, F)
    mask2d = mask_ref[...]                                         # (TB*N, 1)

    # GraphConvolution support: one merged (TB*N, F) @ (F, H) MXU call.
    support = jnp.dot(x2d.astype(mm_dtype), w_gc_ref[...].astype(mm_dtype),
                      preferred_element_type=jnp.float32)          # (TB*N, H)
    support3 = support.reshape(tb, n, h)
    adjb = adj_ref[...]                                            # (TB, N, N)

    if n <= 16:
        # Small N: TB separate (N,N)@(N,H) matmuls would waste almost the whole
        # MXU tile; do the contraction on the VPU instead (unrolled
        # broadcast-multiply-accumulate over the reduction dim).
        gc3 = adjb[:, :, 0:1] * support3[:, 0:1, :]
        for m in range(1, n):
            gc3 = gc3 + adjb[:, :, m:m + 1] * support3[:, m:m + 1, :]
    else:
        # Large N: batched MXU contraction.
        # TODO(synk): for very large N, tile this reduction with a second
        #             "arbitrary" grid axis + VMEM accumulator so the (N, N)
        #             adj block fits v7x's 64 MiB VMEM.
        gc3 = jnp.einsum("bnm,bmh->bnh", adjb.astype(mm_dtype),
                         support3.astype(mm_dtype),
                         preferred_element_type=jnp.float32)

    gc2d = jnp.maximum(gc3, 0.0).reshape(tb * n, h) * mask2d       # (TB*N, H)

    # Fused Linear(H -> H) and Linear(H -> 1): one (TB*N, H) @ (H, H+1) call.
    fused = jnp.dot(gc2d.astype(mm_dtype), w_fused_ref[...].astype(mm_dtype),
                    preferred_element_type=jnp.float32) + b_fused_ref[...]
    att = jax.nn.sigmoid(fused[:, h:h + 1])                        # (TB*N, 1)
    hid = jnp.maximum(fused[:, :h], 0.0)                           # (TB*N, H)

    y3 = (att * hid * mask2d).reshape(tb, n, h)                    # (TB, N, H)

    # Graph embedding: sum over nodes * max over nodes; one (TB, H) slab store.
    o_ref[...] = jnp.sum(y3, axis=1) * jnp.max(y3, axis=1)


def graph_embedding_without_sin(x, adj, mask, params, *, batch_block=None,
                                use_bf16_matmul=False):
    """x: [B, N, F] f32, adj: [B, N, N] f32, mask: [B, N, 1] f32 -> [B, H] f32."""
    B, N, F = x.shape
    H = params["w_gc"].shape[1]

    tb = (_choose_batch_block(B, N, F, H) if batch_block is None
          else max(1, min(batch_block, B)))
    n_blocks = pl.cdiv(B, tb)
    Bp = n_blocks * tb
    if Bp != B:
        pad = Bp - B
        # Zero padding is exact: padded graphs have mask == 0 -> y == 0.
        x = jnp.pad(x, ((0, pad), (0, 0), (0, 0)))
        adj = jnp.pad(adj, ((0, pad), (0, 0), (0, 0)))
        mask = jnp.pad(mask, ((0, pad), (0, 0), (0, 0)))

    # Hoist reshapes out of the kernel (free metadata ops in XLA).  A leading
    # n_blocks axis means every block dim equals the full array dim, so the
    # (8,128) BlockSpec constraint never triggers for any tb/N/F/H.
    x_r = x.reshape(n_blocks, tb * N, F).astype(jnp.float32)
    adj_r = adj.reshape(n_blocks, tb, N, N).astype(jnp.float32)
    mask_r = mask.reshape(n_blocks, tb * N, 1).astype(jnp.float32)

    # Fuse the attention column / bias into the hidden-layer weight / bias.
    w_fused = jnp.concatenate(
        [params["w_ln_t"], params["w_att_col"]], axis=1).astype(jnp.float32)
    b_fused = jnp.concatenate(
        [params["b_ln"], params["b_att"].reshape(1, 1)], axis=1).astype(jnp.float32)

    kernel = functools.partial(_graph_emb_kernel, use_bf16=use_bf16_matmul)

    # TODO(synk): if H/F grow large, set pipeline_mode=pl.Buffered(1) on the
    #             constant-index weight specs to stop double-buffering them.
    out = pl.pallas_call(
        kernel,
        out_shape=jax.ShapeDtypeStruct((n_blocks, tb, H), jnp.float32),
        grid_spec=pltpu.PrefetchScalarGridSpec(
            num_scalar_prefetch=0,
            grid=(n_blocks,),
            in_specs=[
                pl.BlockSpec((None, tb * N, F), lambda b: (b, 0, 0)),    # x rows
                pl.BlockSpec((None, tb, N, N), lambda b: (b, 0, 0, 0)),  # adj
                pl.BlockSpec((None, tb * N, 1), lambda b: (b, 0, 0)),    # mask
                pl.BlockSpec((F, H), lambda b: (0, 0)),                  # w_gc
                pl.BlockSpec((H, H + 1), lambda b: (0, 0)),              # w_ln^T|w_att
                pl.BlockSpec((1, H + 1), lambda b: (0, 0)),              # b_ln|b_att
            ],
            out_specs=pl.BlockSpec((None, tb, H), lambda b: (b, 0, 0)),
        ),
        compiler_params=pltpu.CompilerParams(
            # Batch-block axis is independent -> v7x's 2 TensorCores split it
            # (>= 2 blocks guaranteed by _choose_batch_block when B >= 2).
            dimension_semantics=("parallel",),
            vmem_limit_bytes=_VMEM_LIMIT_BYTES),
    )(x_r, adj_r, mask_r, params["w_gc"], w_fused, b_fused)
    return out.reshape(Bp, H)[:B]


def _reference(x, adj, mask, params):
    support = jnp.einsum("bnf,fh->bnh", x, params["w_gc"])
    gc = jnp.maximum(jnp.einsum("bnm,bmh->bnh", adj, support), 0.0) * mask
    att = jax.nn.sigmoid(
        jnp.einsum("bnh,ho->bno", gc, params["w_att_col"]) + params["b_att"][0])
    h = jnp.maximum(jnp.einsum("bnh,hk->bnk", gc, params["w_ln_t"])
                    + params["b_ln"], 0.0)
    y = att * h * mask
    return jnp.sum(y, axis=1) * jnp.max(y, axis=1)


def init_params(key, feature_dim_size, hidden_size):
    k1, k2, k3, k4, k5 = jax.random.split(key, 5)
    # GraphConvolution weight: uniform(-stdv, stdv), stdv = sqrt(6/(in+out))
    stdv = math.sqrt(6.0 / (feature_dim_size + hidden_size))
    w_gc = jax.random.uniform(k1, (feature_dim_size, hidden_size),
                              jnp.float32, -stdv, stdv)
    # soft_att = nn.Linear(hidden, 1); stored as a column (H, 1) for the MXU.
    bnd_att = 1.0 / math.sqrt(hidden_size)
    w_att_col = jax.random.uniform(k2, (hidden_size, 1), jnp.float32,
                                   -bnd_att, bnd_att)
    b_att = jax.random.uniform(k3, (1,), jnp.float32, -bnd_att, bnd_att)
    # ln = nn.Linear(hidden, hidden); stored pre-transposed so y = x @ w_ln_t + b
    bnd_ln = 1.0 / math.sqrt(hidden_size)
    w_ln_t = jax.random.uniform(k4, (hidden_size, hidden_size),
                                jnp.float32, -bnd_ln, bnd_ln)
    b_ln = jax.random.uniform(k5, (1, hidden_size), jnp.float32, -bnd_ln, bnd_ln)
    return {"w_gc": w_gc, "w_att_col": w_att_col, "b_att": b_att,
            "w_ln_t": w_ln_t, "b_ln": b_ln}


if __name__ == "__main__":
    B, N, F, H = 2, 8, 16, 32

    key = jax.random.PRNGKey(0)
    kx, ka, km, kp = jax.random.split(key, 4)

    x = jax.random.normal(kx, (B, N, F), jnp.float32)
    adj = jax.random.uniform(ka, (B, N, N), jnp.float32)
    mask = (jax.random.uniform(km, (B, N, 1)) > 0.2).astype(jnp.float32)
    params = init_params(kp, F, H)

    out = jax.block_until_ready(graph_embedding_without_sin(x, adj, mask, params))
    ref = _reference(x, adj, mask, params)
    assert out.shape == (B, H)
    assert jnp.allclose(out, ref, rtol=2e-5, atol=1e-4), "mismatch vs reference"

    # Second check: non-divisible batch exercises the zero-padding path.
    B2 = 5
    kx2, ka2, km2 = jax.random.split(jax.random.PRNGKey(1), 3)
    x2 = jax.random.normal(kx2, (B2, N, F), jnp.float32)
    adj2 = jax.random.uniform(ka2, (B2, N, N), jnp.float32)
    mask2 = (jax.random.uniform(km2, (B2, N, 1)) > 0.2).astype(jnp.float32)
    out2 = jax.block_until_ready(
        graph_embedding_without_sin(x2, adj2, mask2, params))
    ref2 = _reference(x2, adj2, mask2, params)
    assert out2.shape == (B2, H)
    assert jnp.allclose(out2, ref2, rtol=2e-5, atol=1e-4), "padded mismatch"

    print("KERNEL_OK")
</pallas_src>

<mosaic_0001>
module attributes {stable_mosaic.version = 11 : i64} {
  func.func @_graph_emb_kernel(%arg0: i32, %arg1: memref<1x8x16xf32, #tpu.memory_space<vmem>>, %arg2: memref<1x1x8x8xf32, #tpu.memory_space<vmem>>, %arg3: memref<1x8x1xf32, #tpu.memory_space<vmem>>, %arg4: memref<16x32xf32, #tpu.memory_space<vmem>>, %arg5: memref<32x33xf32, #tpu.memory_space<vmem>>, %arg6: memref<1x33xf32, #tpu.memory_space<vmem>>, %arg7: memref<1x1x32xf32, #tpu.memory_space<vmem>>) attributes {dimension_semantics = [#tpu.dimension_semantics<parallel>], iteration_bounds = array<i64: 2>, scalar_prefetch = 0 : i64, scratch_operands = 0 : i64, tpu.core_type = #tpu.core_type<tc>, window_params = [{transform_indices = @transform_0, window_bounds = array<i64: 1, 8, 16>}, {transform_indices = @transform_1, window_bounds = array<i64: 1, 1, 8, 8>}, {transform_indices = @transform_2, window_bounds = array<i64: 1, 8, 1>}, {pipeline_mode = #tpu.pipeline_mode<synchronous>, transform_indices = @transform_3, window_bounds = array<i64: 16, 32>}, {pipeline_mode = #tpu.pipeline_mode<synchronous>, transform_indices = @transform_4, window_bounds = array<i64: 32, 33>}, {pipeline_mode = #tpu.pipeline_mode<synchronous>, transform_indices = @transform_5, window_bounds = array<i64: 1, 33>}, {transform_indices = @transform_6, window_bounds = array<i64: 1, 1, 32>}]} {
    %c0 = arith.constant 0 : index
    %c0_0 = arith.constant 0 : index
    %c0_1 = arith.constant 0 : index
    %0 = vector.load %arg1[%c0, %c0_0, %c0_1] : memref<1x8x16xf32, #tpu.memory_space<vmem>>, vector<1x8x16xf32>
    %1 = vector.shape_cast %0 : vector<1x8x16xf32> to vector<8x16xf32>
    %c0_2 = arith.constant 0 : index
    %c0_3 = arith.constant 0 : index
    %c0_4 = arith.constant 0 : index
    %2 = vector.load %arg3[%c0_2, %c0_3, %c0_4] : memref<1x8x1xf32, #tpu.memory_space<vmem>>, vector<1x8x1xf32>
    %3 = vector.shape_cast %2 : vector<1x8x1xf32> to vector<8x1xf32>
    %c0_5 = arith.constant 0 : index
    %c0_6 = arith.constant 0 : index
    %4 = vector.load %arg4[%c0_5, %c0_6] : memref<16x32xf32, #tpu.memory_space<vmem>>, vector<16x32xf32>
    %cst = arith.constant dense<0.000000e+00> : vector<8x32xf32>
    %5 = tpu.matmul %1, %4, %cst {dimension_numbers = #tpu.dot_dimension_numbers<[1], [0], [0], [1], [0, 0, 1, 1], [], []>} : vector<8x16xf32>, vector<16x32xf32>, vector<8x32xf32> -> vector<8x32xf32>
    %6 = vector.shape_cast %5 : vector<8x32xf32> to vector<1x8x32xf32>
    %c0_7 = arith.constant 0 : index
    %c0_8 = arith.constant 0 : index
    %c0_9 = arith.constant 0 : index
    %c0_10 = arith.constant 0 : index
    %7 = vector.load %arg2[%c0_7, %c0_8, %c0_9, %c0_10] : memref<1x1x8x8xf32, #tpu.memory_space<vmem>>, vector<1x1x8x8xf32>
    %8 = vector.shape_cast %7 : vector<1x1x8x8xf32> to vector<1x8x8xf32>
    %9 = vector.extract_strided_slice %8 {offsets = [0, 0, 0], sizes = [1, 8, 1], strides = [1, 1, 1]} : vector<1x8x8xf32> to vector<1x8x1xf32>
    %10 = vector.extract_strided_slice %6 {offsets = [0, 0, 0], sizes = [1, 1, 32], strides = [1, 1, 1]} : vector<1x8x32xf32> to vector<1x1x32xf32>
    %11 = vector.broadcast %9 : vector<1x8x1xf32> to vector<1x8x32xf32>
    %12 = vector.broadcast %10 : vector<1x1x32xf32> to vector<1x8x32xf32>
    %13 = arith.mulf %11, %12 : vector<1x8x32xf32>
    %14 = vector.extract_strided_slice %8 {offsets = [0, 0, 1], sizes = [1, 8, 1], strides = [1, 1, 1]} : vector<1x8x8xf32> to vector<1x8x1xf32>
    %15 = vector.extract_strided_slice %6 {offsets = [0, 1, 0], sizes = [1, 1, 32], strides = [1, 1, 1]} : vector<1x8x32xf32> to vector<1x1x32xf32>
    %16 = vector.broadcast %14 : vector<1x8x1xf32> to vector<1x8x32xf32>
    %17 = vector.broadcast %15 : vector<1x1x32xf32> to vector<1x8x32xf32>
    %18 = arith.mulf %16, %17 : vector<1x8x32xf32>
    %19 = arith.addf %13, %18 : vector<1x8x32xf32>
    %20 = vector.extract_strided_slice %8 {offsets = [0, 0, 2], sizes = [1, 8, 1], strides = [1, 1, 1]} : vector<1x8x8xf32> to vector<1x8x1xf32>
    %21 = vector.extract_strided_slice %6 {offsets = [0, 2, 0], sizes = [1, 1, 32], strides = [1, 1, 1]} : vector<1x8x32xf32> to vector<1x1x32xf32>
    %22 = vector.broadcast %20 : vector<1x8x1xf32> to vector<1x8x32xf32>
    %23 = vector.broadcast %21 : vector<1x1x32xf32> to vector<1x8x32xf32>
    %24 = arith.mulf %22, %23 : vector<1x8x32xf32>
    %25 = arith.addf %19, %24 : vector<1x8x32xf32>
    %26 = vector.extract_strided_slice %8 {offsets = [0, 0, 3], sizes = [1, 8, 1], strides = [1, 1, 1]} : vector<1x8x8xf32> to vector<1x8x1xf32>
    %27 = vector.extract_strided_slice %6 {offsets = [0, 3, 0], sizes = [1, 1, 32], strides = [1, 1, 1]} : vector<1x8x32xf32> to vector<1x1x32xf32>
    %28 = vector.broadcast %26 : vector<1x8x1xf32> to vector<1x8x32xf32>
    %29 = vector.broadcast %27 : vector<1x1x32xf32> to vector<1x8x32xf32>
    %30 = arith.mulf %28, %29 : vector<1x8x32xf32>
    %31 = arith.addf %25, %30 : vector<1x8x32xf32>
    %32 = vector.extract_strided_slice %8 {offsets = [0, 0, 4], sizes = [1, 8, 1], strides = [1, 1, 1]} : vector<1x8x8xf32> to vector<1x8x1xf32>
    %33 = vector.extract_strided_slice %6 {offsets = [0, 4, 0], sizes = [1, 1, 32], strides = [1, 1, 1]} : vector<1x8x32xf32> to vector<1x1x32xf32>
    %34 = vector.broadcast %32 : vector<1x8x1xf32> to vector<1x8x32xf32>
    %35 = vector.broadcast %33 : vector<1x1x32xf32> to vector<1x8x32xf32>
    %36 = arith.mulf %34, %35 : vector<1x8x32xf32>
    %37 = arith.addf %31, %36 : vector<1x8x32xf32>
    %38 = vector.extract_strided_slice %8 {offsets = [0, 0, 5], sizes = [1, 8, 1], strides = [1, 1, 1]} : vector<1x8x8xf32> to vector<1x8x1xf32>
    %39 = vector.extract_strided_slice %6 {offsets = [0, 5, 0], sizes = [1, 1, 32], strides = [1, 1, 1]} : vector<1x8x32xf32> to vector<1x1x32xf32>
    %40 = vector.broadcast %38 : vector<1x8x1xf32> to vector<1x8x32xf32>
    %41 = vector.broadcast %39 : vector<1x1x32xf32> to vector<1x8x32xf32>
    %42 = arith.mulf %40, %41 : vector<1x8x32xf32>
    %43 = arith.addf %37, %42 : vector<1x8x32xf32>
    %44 = vector.extract_strided_slice %8 {offsets = [0, 0, 6], sizes = [1, 8, 1], strides = [1, 1, 1]} : vector<1x8x8xf32> to vector<1x8x1xf32>
    %45 = vector.extract_strided_slice %6 {offsets = [0, 6, 0], sizes = [1, 1, 32], strides = [1, 1, 1]} : vector<1x8x32xf32> to vector<1x1x32xf32>
    %46 = vector.broadcast %44 : vector<1x8x1xf32> to vector<1x8x32xf32>
    %47 = vector.broadcast %45 : vector<1x1x32xf32> to vector<1x8x32xf32>
    %48 = arith.mulf %46, %47 : vector<1x8x32xf32>
    %49 = arith.addf %43, %48 : vector<1x8x32xf32>
    %50 = vector.extract_strided_slice %8 {offsets = [0, 0, 7], sizes = [1, 8, 1], strides = [1, 1, 1]} : vector<1x8x8xf32> to vector<1x8x1xf32>
    %51 = vector.extract_strided_slice %6 {offsets = [0, 7, 0], sizes = [1, 1, 32], strides = [1, 1, 1]} : vector<1x8x32xf32> to vector<1x1x32xf32>
    %52 = vector.broadcast %50 : vector<1x8x1xf32> to vector<1x8x32xf32>
    %53 = vector.broadcast %51 : vector<1x1x32xf32> to vector<1x8x32xf32>
    %54 = arith.mulf %52, %53 : vector<1x8x32xf32>
    %55 = arith.addf %49, %54 : vector<1x8x32xf32>
    %cst_11 = arith.constant 0.000000e+00 : f32
    %56 = vector.broadcast %cst_11 : f32 to vector<1x8x32xf32>
    %57 = arith.maximumf %55, %56 : vector<1x8x32xf32>
    %58 = vector.shape_cast %57 : vector<1x8x32xf32> to vector<8x32xf32>
    %59 = vector.broadcast %3 : vector<8x1xf32> to vector<8x32xf32>
    %60 = arith.mulf %58, %59 : vector<8x32xf32>
    %c0_12 = arith.constant 0 : index
    %c0_13 = arith.constant 0 : index
    %61 = vector.load %arg5[%c0_12, %c0_13] : memref<32x33xf32, #tpu.memory_space<vmem>>, vector<32x33xf32>
    %cst_14 = arith.constant dense<0.000000e+00> : vector<8x33xf32>
    %62 = tpu.matmul %60, %61, %cst_14 {dimension_numbers = #tpu.dot_dimension_numbers<[1], [0], [0], [1], [0, 0, 1, 1], [], []>} : vector<8x32xf32>, vector<32x33xf32>, vector<8x33xf32> -> vector<8x33xf32>
    %c0_15 = arith.constant 0 : index
    %c0_16 = arith.constant 0 : index
    %63 = vector.load %arg6[%c0_15, %c0_16] : memref<1x33xf32, #tpu.memory_space<vmem>>, vector<1x33xf32>
    %64 = vector.broadcast %63 : vector<1x33xf32> to vector<8x33xf32>
    %65 = arith.addf %62, %64 : vector<8x33xf32>
    %66 = vector.extract_strided_slice %65 {offsets = [0, 32], sizes = [8, 1], strides = [1, 1]} : vector<8x33xf32> to vector<8x1xf32>
    %67 = arith.negf %66 : vector<8x1xf32>
    %68 = math.exp %67 : vector<8x1xf32>
    %cst_17 = arith.constant 1.000000e+00 : f32
    %69 = vector.broadcast %cst_17 : f32 to vector<8x1xf32>
    %70 = arith.addf %69, %68 : vector<8x1xf32>
    %71 = arith.divf %69, %70 : vector<8x1xf32>
    %72 = vector.extract_strided_slice %65 {offsets = [0, 0], sizes = [8, 32], strides = [1, 1]} : vector<8x33xf32> to vector<8x32xf32>
    %cst_18 = arith.constant 0.000000e+00 : f32
    %73 = vector.broadcast %cst_18 : f32 to vector<8x32xf32>
    %74 = arith.maximumf %72, %73 : vector<8x32xf32>
    %75 = vector.broadcast %71 : vector<8x1xf32> to vector<8x32xf32>
    %76 = arith.mulf %75, %74 : vector<8x32xf32>
    %77 = vector.broadcast %3 : vector<8x1xf32> to vector<8x32xf32>
    %78 = arith.mulf %76, %77 : vector<8x32xf32>
    %79 = vector.shape_cast %78 : vector<8x32xf32> to vector<1x8x32xf32>
    %cst_19 = arith.constant dense<0.000000e+00> : vector<1x32xf32>
    %80 = vector.multi_reduction <add>, %79, %cst_19 [1] : vector<1x8x32xf32> to vector<1x32xf32>
    %cst_20 = arith.constant dense<0xFF800000> : vector<1x32xf32>
    %81 = vector.multi_reduction <maximumf>, %79, %cst_20 [1] : vector<1x8x32xf32> to vector<1x32xf32>
    %82 = arith.mulf %80, %81 : vector<1x32xf32>
    %c0_21 = arith.constant 0 : index
    %c0_22 = arith.constant 0 : index
    %c0_23 = arith.constant 0 : index
    %83 = vector.load %arg7[%c0_21, %c0_22, %c0_23] : memref<1x1x32xf32, #tpu.memory_space<vmem>>, vector<1x1x32xf32>
    %84 = vector.shape_cast %83 : vector<1x1x32xf32> to vector<1x32xf32>
    %85 = vector.shape_cast %82 : vector<1x32xf32> to vector<1x1x32xf32>
    tpu.vector_store %arg7[%c0_21, %c0_22, %c0_23], %85 {strides = array<i32>} : memref<1x1x32xf32, #tpu.memory_space<vmem>>, vector<1x1x32xf32>,
    return
  }
  func.func @transform_0(%arg0: i32) -> (i32, i32, i32) {
    %c0_i32 = arith.constant 0 : i32
    %c0_i32_0 = arith.constant 0 : i32
    %c0_i32_1 = arith.constant 0 : i32
    return %arg0, %c0_i32, %c0_i32_0 : i32, i32, i32
  }
  func.func @transform_1(%arg0: i32) -> (i32, i32, i32, i32) {
    %c0_i32 = arith.constant 0 : i32
    %c0_i32_0 = arith.constant 0 : i32
    %c0_i32_1 = arith.constant 0 : i32
    %c0_i32_2 = arith.constant 0 : i32
    return %arg0, %c0_i32, %c0_i32_0, %c0_i32_1 : i32, i32, i32, i32
  }
  func.func @transform_2(%arg0: i32) -> (i32, i32, i32) {
    %c0_i32 = arith.constant 0 : i32
    %c0_i32_0 = arith.constant 0 : i32
    %c0_i32_1 = arith.constant 0 : i32
    return %arg0, %c0_i32, %c0_i32_0 : i32, i32, i32
  }
  func.func @transform_3(%arg0: i32) -> (i32, i32) {
    %c0_i32 = arith.constant 0 : i32
    %c0_i32_0 = arith.constant 0 : i32
    %c0_i32_1 = arith.constant 0 : i32
    return %c0_i32, %c0_i32_0 : i32, i32
  }
  func.func @transform_4(%arg0: i32) -> (i32, i32) {
    %c0_i32 = arith.constant 0 : i32
    %c0_i32_0 = arith.constant 0 : i32
    %c0_i32_1 = arith.constant 0 : i32
    return %c0_i32, %c0_i32_0 : i32, i32
  }
  func.func @transform_5(%arg0: i32) -> (i32, i32) {
    %c0_i32 = arith.constant 0 : i32
    %c0_i32_0 = arith.constant 0 : i32
    %c0_i32_1 = arith.constant 0 : i32
    return %c0_i32, %c0_i32_0 : i32, i32
  }
  func.func @transform_6(%arg0: i32) -> (i32, i32, i32) {
    %c0_i32 = arith.constant 0 : i32
    %c0_i32_0 = arith.constant 0 : i32
    %c0_i32_1 = arith.constant 0 : i32
    return %arg0, %c0_i32, %c0_i32_0 : i32, i32, i32
  }
}

</mosaic_0001>

<llo_original>
// kernel: tpu_custom_call.1
$region0: #{tpu_custom_call.1}
  #allocation0 [shape = 'u32[]', space=smem, size = 0x4, offset = 0x4, fixed_abs, tag = 'smem constant byte address 0x4 - core index']
  #allocation1 [shape = 'u32[144,128]{1,0:T(1,128)}', space=vmem, size = 0x12000, scoped, tag = 'internal scratch']
  %s0 = inlined_call_operand.hbm [shape: f32[2,8,16], index: 0, kind: input, shape index: {}]
  %s1 = inlined_call_operand.hbm [shape: f32[2,1,8,8], index: 1, kind: input, shape index: {}]
  %s2 = inlined_call_operand.vmem [shape: f32[2,8,1], index: 2, kind: input, shape index: {}]
  %s3 = inlined_call_operand.hbm [shape: f32[16,32], index: 3, kind: input, shape index: {}]
  %s4 = inlined_call_operand.vmem [shape: f32[32,33], index: 4, kind: input, shape index: {}]
  %s5 = inlined_call_operand.vmem [shape: f32[1,33], index: 5, kind: input, shape index: {}]
  %s6 = inlined_call_operand.hbm [shape: f32[2,1,32], index: 6, kind: output, shape index: {}]
  %s7 = sld [smem:[#allocation0]]
  $region69: #{tpu_custom_call.1} parent=0
    _
  %s9 = ssub.s32 1, %s7
  %s10 = scalar_select 0, %s9, %s7
  $region1: #{tpu_custom_call.1} parent=0
    #allocation2 [shape = 'u8[8192]{0}', space=vmem, size = 0x2000, scoped, tag = 'input window, operand 0']
    #allocation3 [shape = 's32[2]{0}', space=sflag, size = 0x8, scoped, tag = 'scoped memory for tpu_custom_call.1']
    #allocation4 [shape = 's32[2]{0}', space=sflag, size = 0x8, scoped, tag = 'scoped memory for tpu_custom_call.1']
    #allocation5 [shape = 'u8[8192]{0}', space=vmem, size = 0x2000, scoped, tag = 'input window, operand 1']
    #allocation6 [shape = 's32[2]{0}', space=sflag, size = 0x8, scoped, tag = 'scoped memory for tpu_custom_call.1']
    #allocation7 [shape = 'u8[8192]{0}', space=vmem, size = 0x2000, scoped, tag = 'input window, operand 3, single buffered']
    #allocation8 [shape = 'u8[1024]{0}', space=vmem, size = 0x400, scoped, tag = 'output window, operand 0']
    %11 = vsyncpa [#allocation3], 0
    %s12 = scalar_lea.sflag [#allocation3], 1
    %13 = vsyncpa %s12, 0
    %14 = vsyncpa [#allocation6], 0
    %s15 = scalar_lea.sflag [#allocation6], 1
    %16 = vsyncpa %s15, 0
    %17 = vsyncpa [#allocation4], 0
    %s18 = scalar_lea.sflag [#allocation4], 1
    %19 = vsyncpa %s18, 0
    loop: start=0, step=1, limit=4
    $region2: #{tpu_custom_call.1} parent=1 // loop_pre_header
      _
    $region3: #{tpu_custom_call.1} parent=1 // loop_header
      %s21 = sphi 0, %s25
      %p22 = scmp.ge.s32.totalorder %s21, 4
      %s31 = sphi 0, %s33
      %s34 = sphi 0, %s31
      %s35 = sphi 0, %s34
      %s51 = sphi 0, %s35
      %s57 = sphi 0, %s59
      %s60 = sphi 0, %s57
      %s61 = sphi 0, %s60
      %s77 = sphi 0, %s61
      %s83 = sphi 0, %s85
      %s86 = sphi 0, %s83
      %s87 = sphi 0, %s86
      %s103 = sphi 0, %s87
      %s107 = sphi 0, %s107
      %s109 = sphi 0, %s107
      %s110 = sphi 0, %s109
      %s124 = sphi 0, %s110
      %s128 = sphi 0, %s128
      %s130 = sphi 0, %s128
      %s131 = sphi 0, %s130
      %s145 = sphi 0, %s131
      %s149 = sphi 0, %s149
      %s151 = sphi 0, %s149
      %s152 = sphi 0, %s151
      %s166 = sphi 0, %s152
      %s172 = sphi 0, %s174
      %s175 = sphi 0, %s172
      %s176 = sphi 0, %s175
      %s192 = sphi 0, %s176
    $region4: #{tpu_custom_call.1} parent=1 // loop_header_branch
      %24 = sbr.rel (%p22) target = $region8
    $region5: #{tpu_custom_call.1} parent=1 // loop_body
      %s26 = ssub.s32 %s21, 1
      %s27 = ssub.s32 %s21, 2
      %s28 = sadd.s32 %s21, 1
      %s29 = ssub.s32 %s21, %s28
      %p30 = scmp.eq.s32.totalorder %s29, 0
      %s32 = sadd.s32 %s31, 1
      %s33 = scalar_select %p30, %s31, %s32
      %p36 = pneg %p30
      %p37 = scmp.eq.s32.totalorder %s21, 1
      %p38 = por %p36, %p37
      %p39 = scmp.ne.s32.totalorder %s31, %s34
      %p40 = scmp.eq.s32.totalorder %s21, 0
      %p41 = por %p39, %p40
      %p42 = scmp.ne.s32.totalorder %s31, %s34
      %p43 = scmp.eq.s32.totalorder %s26, 1
      %p44 = por %p42, %p43
      %p45 = scmp.ne.s32.totalorder %s34, %s35
      %p46 = scmp.eq.s32.totalorder %s26, 0
      %p47 = por %p45, %p46
      %p48 = scmp.ne.s32.totalorder %s34, %s35
      %p49 = scmp.eq.s32.totalorder %s27, 1
      %p50 = por %p48, %p49
      %p52 = scmp.ne.s32.totalorder %s35, %s51
      %p53 = scmp.eq.s32.totalorder %s27, 0
      %p54 = por %p52, %p53
      %s55 = ssub.s32 %s21, %s28
      %p56 = scmp.eq.s32.totalorder %s55, 0
      %s58 = sadd.s32 %s57, 1
      %s59 = scalar_select %p56, %s57, %s58
      %p62 = pneg %p56
      %p63 = scmp.eq.s32.totalorder %s21, 1
      %p64 = por %p62, %p63
      %p65 = scmp.ne.s32.totalorder %s57, %s60
      %p66 = scmp.eq.s32.totalorder %s21, 0
      %p67 = por %p65, %p66
      %p68 = scmp.ne.s32.totalorder %s57, %s60
      %p69 = scmp.eq.s32.totalorder %s26, 1
      %p70 = por %p68, %p69
      %p71 = scmp.ne.s32.totalorder %s60, %s61
      %p72 = scmp.eq.s32.totalorder %s26, 0
      %p73 = por %p71, %p72
      %p74 = scmp.ne.s32.totalorder %s60, %s61
      %p75 = scmp.eq.s32.totalorder %s27, 1
      %p76 = por %p74, %p75
      %p78 = scmp.ne.s32.totalorder %s61, %s77
      %p79 = scmp.eq.s32.totalorder %s27, 0
      %p80 = por %p78, %p79
      %s81 = ssub.s32 %s21, %s28
      %p82 = scmp.eq.s32.totalorder %s81, 0
      %s84 = sadd.s32 %s83, 1
      %s85 = scalar_select %p82, %s83, %s84
      %p88 = pneg %p82
      %p89 = scmp.eq.s32.totalorder %s21, 1
      %p90 = por %p88, %p89
      %p91 = scmp.ne.s32.totalorder %s83, %s86
      %p92 = scmp.eq.s32.totalorder %s21, 0
      %p93 = por %p91, %p92
      %p94 = scmp.ne.s32.totalorder %s83, %s86
      %p95 = scmp.eq.s32.totalorder %s26, 1
      %p96 = por %p94, %p95
      %p97 = scmp.ne.s32.totalorder %s86, %s87
      %p98 = scmp.eq.s32.totalorder %s26, 0
      %p99 = por %p97, %p98
      %p100 = scmp.ne.s32.totalorder %s86, %s87
      %p101 = scmp.eq.s32.totalorder %s27, 1
      %p102 = por %p100, %p101
      %p104 = scmp.ne.s32.totalorder %s87, %s103
      %p105 = scmp.eq.s32.totalorder %s27, 0
      %p106 = por %p104, %p105
      %s108 = sadd.s32 %s107, 1
      %p111 = scmp.eq.s32.totalorder %s21, 1
      %p112 = scmp.ne.s32.totalorder %s107, %s109
      %p113 = scmp.eq.s32.totalorder %s21, 0
      %p114 = por %p112, %p113
      %p115 = scmp.ne.s32.totalorder %s107, %s109
      %p116 = scmp.eq.s32.totalorder %s26, 1
      %p117 = por %p115, %p116
      %p118 = scmp.ne.s32.totalorder %s109, %s110
      %p119 = scmp.eq.s32.totalorder %s26, 0
      %p120 = por %p118, %p119
      %p121 = scmp.ne.s32.totalorder %s109, %s110
      %p122 = scmp.eq.s32.totalorder %s27, 1
      %p123 = por %p121, %p122
      %p125 = scmp.ne.s32.totalorder %s110, %s124
      %p126 = scmp.eq.s32.totalorder %s27, 0
      %p127 = por %p125, %p126
      %s129 = sadd.s32 %s128, 1
      %p132 = scmp.eq.s32.totalorder %s21, 1
      %p133 = scmp.ne.s32.totalorder %s128, %s130
      %p134 = scmp.eq.s32.totalorder %s21, 0
      %p135 = por %p133, %p134
      %p136 = scmp.ne.s32.totalorder %s128, %s130
      %p137 = scmp.eq.s32.totalorder %s26, 1
      %p138 = por %p136, %p137
      %p139 = scmp.ne.s32.totalorder %s130, %s131
      %p140 = scmp.eq.s32.totalorder %s26, 0
      %p141 = por %p139, %p140
      %p142 = scmp.ne.s32.totalorder %s130, %s131
      %p143 = scmp.eq.s32.totalorder %s27, 1
      %p144 = por %p142, %p143
      %p146 = scmp.ne.s32.totalorder %s131, %s145
      %p147 = scmp.eq.s32.totalorder %s27, 0
      %p148 = por %p146, %p147
      %s150 = sadd.s32 %s149, 1
      %p153 = scmp.eq.s32.totalorder %s21, 1
      %p154 = scmp.ne.s32.totalorder %s149, %s151
      %p155 = scmp.eq.s32.totalorder %s21, 0
      %p156 = por %p154, %p155
      %p157 = scmp.ne.s32.totalorder %s149, %s151
      %p158 = scmp.eq.s32.totalorder %s26, 1
      %p159 = por %p157, %p158
      %p160 = scmp.ne.s32.totalorder %s151, %s152
      %p161 = scmp.eq.s32.totalorder %s26, 0
      %p162 = por %p160, %p161
      %p163 = scmp.ne.s32.totalorder %s151, %s152
      %p164 = scmp.eq.s32.totalorder %s27, 1
      %p165 = por %p163, %p164
      %p167 = scmp.ne.s32.totalorder %s152, %s166
      %p168 = scmp.eq.s32.totalorder %s27, 0
      %p169 = por %p167, %p168
      %s170 = ssub.s32 %s21, %s28
      %p171 = scmp.eq.s32.totalorder %s170, 0
      %s173 = sadd.s32 %s172, 1
      %s174 = scalar_select %p171, %s172, %s173
      %p177 = pneg %p171
      %p178 = scmp.eq.s32.totalorder %s21, 1
      %p179 = por %p177, %p178
      %p180 = scmp.ne.s32.totalorder %s172, %s175
      %p181 = scmp.eq.s32.totalorder %s21, 0
      %p182 = por %p180, %p181
      %p183 = scmp.ne.s32.totalorder %s172, %s175
      %p184 = scmp.eq.s32.totalorder %s26, 1
      %p185 = por %p183, %p184
      %p186 = scmp.ne.s32.totalorder %s175, %s176
      %p187 = scmp.eq.s32.totalorder %s26, 0
      %p188 = por %p186, %p187
      %p189 = scmp.ne.s32.totalorder %s175, %s176
      %p190 = scmp.eq.s32.totalorder %s27, 1
      %p191 = por %p189, %p190
      %p193 = scmp.ne.s32.totalorder %s176, %s192
      %p194 = scmp.eq.s32.totalorder %s27, 0
      %p195 = por %p193, %p194
      %p196 = scmp.le.s32.totalorder 1, %s21
      %p197 = scmp.lt.s32.totalorder %s21, 3
      %p198 = pnand %p196, %p197
      %p199 = pneg %p198
      // Predicated region
      $region9: #{tpu_custom_call.1} parent=5 // pred_check
        _
      $region10: #{tpu_custom_call.1} parent=5 // pred_check_branch
        %201 = sbr.rel (%p198) target = $region12
      $region11: #{tpu_custom_call.1} parent=5 // pred_region
        %s202 = ssub.s32 %s21, 1
        // Predicated region
        $region13: #{tpu_custom_call.1} parent=11 // pred_check
          %p203 = pneg %p120
        $region14: #{tpu_custom_call.1} parent=11 // pred_check_branch
          %205 = sbr.rel (%p203) target = $region16
        $region15: #{tpu_custom_call.1} parent=11 // pred_region
          %s207 = ssub.s32 256, 256
          %208 = vsyncadd [#allocation6], %s207
          %s209 = sshll.u32 [#allocation7], 4
          %s210 = int_to_ptr.vmem [resolvable:$true] %s209
          %215 = dma.hbm_to_vmem [thread:$0]  %s3, 256, %s210, [#allocation6], 128, 128, 8
        $region16: #{tpu_custom_call.1} parent=11 // pred_fallthru
          _
        // Predicated region
        $region17: #{tpu_custom_call.1} parent=11 // pred_check
          %p216 = pneg %p141
        $region18: #{tpu_custom_call.1} parent=11 // pred_check_branch
          %218 = sbr.rel (%p216) target = $region20
        $region19: #{tpu_custom_call.1} parent=11 // pred_region
          _
        $region20: #{tpu_custom_call.1} parent=11 // pred_fallthru
          _
        // Predicated region
        $region21: #{tpu_custom_call.1} parent=11 // pred_check
          %p219 = pneg %p162
        $region22: #{tpu_custom_call.1} parent=11 // pred_check_branch
          %221 = sbr.rel (%p219) target = $region24
        $region23: #{tpu_custom_call.1} parent=11 // pred_region
          _
        $region24: #{tpu_custom_call.1} parent=11 // pred_fallthru
          _
      $region12: #{tpu_custom_call.1} parent=5 // pred_fallthru
        _
      %p222 = scmp.lt.s32.totalorder %s21, 2
      // Predicated region
      $region25: #{tpu_custom_call.1} parent=5 // pred_check
        %p223 = pneg %p222
      $region26: #{tpu_custom_call.1} parent=5 // pred_check_branch
        %225 = sbr.rel (%p223) target = $region28
      $region27: #{tpu_custom_call.1} parent=5 // pred_region
        // Predicated region
        $region29: #{tpu_custom_call.1} parent=27 // pred_check
          %p226 = pneg %p41
        $region30: #{tpu_custom_call.1} parent=27 // pred_check_branch
          %228 = sbr.rel (%p226) target = $region32
        $region31: #{tpu_custom_call.1} parent=27 // pred_region
          %s229 = sand.u32 %s31, 1
          %s230 = scalar_lea.sflag [#allocation3], %s229
          %s231 = sand.u32 %s31, 1
          %s232 = smul.addr %s231, 8
          %s233 = scalar_lea.vmem [#allocation2], %s232
          %s235 = ssub.s32 128, 128
          %236 = vsyncadd %s230, %s235
          %s237 = smul.addr %s21, 128
          %s238 = scalar_lea.hbm %s0, %s237
          %s240 = sshll.u32 %s233, 4
          %s241 = int_to_ptr.vmem [resolvable:$true] %s240
          %243 = dma.hbm_to_vmem [thread:$0]  %s238, 128, %s241, %s230
        $region32: #{tpu_custom_call.1} parent=27 // pred_fallthru
          _
        // Predicated region
        $region33: #{tpu_custom_call.1} parent=27 // pred_check
          %p244 = pneg %p67
        $region34: #{tpu_custom_call.1} parent=27 // pred_check_branch
          %246 = sbr.rel (%p244) target = $region36
        $region35: #{tpu_custom_call.1} parent=27 // pred_region
          %s247 = sand.u32 %s21, 1
          %s248 = scalar_lea.sflag [#allocation6], %s247
          %s249 = sand.u32 %s57, 1
          %s250 = smul.addr %s249, 8
          %s251 = scalar_lea.vmem [#allocation5], %s250
          %s253 = ssub.s32 128, 128
          %254 = vsyncadd %s248, %s253
          %s255 = smul.addr %s21, 128
          %s256 = scalar_lea.hbm %s1, %s255
          %s258 = sshll.u32 %s251, 4
          %s259 = int_to_ptr.vmem [resolvable:$true] %s258
          %261 = dma.hbm_to_vmem [thread:$0]  %s256, 128, %s259, %s248
        $region36: #{tpu_custom_call.1} parent=27 // pred_fallthru
          _
        // Predicated region
        $region37: #{tpu_custom_call.1} parent=27 // pred_check
          %p262 = pneg %p93
        $region38: #{tpu_custom_call.1} parent=27 // pred_check_branch
          %264 = sbr.rel (%p262) target = $region40
        $region39: #{tpu_custom_call.1} parent=27 // pred_region
          %p265 = scmp.lt.s32.totalorder %s21, 1
          %s266 = scalar_select %p265, %s21, 1
          %s267 = smul.addr %s266, 8
          %s268 = scalar_lea.vmem %s2, %s267
        $region40: #{tpu_custom_call.1} parent=27 // pred_fallthru
          _
      $region28: #{tpu_custom_call.1} parent=5 // pred_fallthru
        _
      %p269 = scmp.le.s32.totalorder 1, %s21
      %p270 = scmp.lt.s32.totalorder %s21, 3
      %p271 = pnand %p269, %p270
      %p272 = pneg %p271
      // Predicated region
      $region41: #{tpu_custom_call.1} parent=5 // pred_check
        _
      $region42: #{tpu_custom_call.1} parent=5 // pred_check_branch
        %274 = sbr.rel (%p271) target = $region44
      $region43: #{tpu_custom_call.1} parent=5 // pred_region
        %s275 = ssub.s32 %s21, 1
        %s276 = sand.u32 %s34, 1
        %s277 = scalar_lea.sflag [#allocation3], %s276
        %s278 = sand.u32 %s34, 1
        %s279 = smul.addr %s278, 8
        %s280 = scalar_lea.vmem [#allocation2], %s279
        // Predicated region
        $region45: #{tpu_custom_call.1} parent=43 // pred_check
          %p281 = pneg %p47
        $region46: #{tpu_custom_call.1} parent=43 // pred_check_branch
          %283 = sbr.rel (%p281) target = $region48
        $region47: #{tpu_custom_call.1} parent=43 // pred_region
          %284 = dma.done %s277, 128
        $region48: #{tpu_custom_call.1} parent=43 // pred_fallthru
          _
        %s285 = sand.u32 %s26, 1
        %s286 = scalar_lea.sflag [#allocation6], %s285
        %s287 = sand.u32 %s60, 1
        %s288 = smul.addr %s287, 8
        %s289 = scalar_lea.vmem [#allocation5], %s288
        // Predicated region
        $region49: #{tpu_custom_call.1} parent=43 // pred_check
          %p290 = pneg %p73
        $region50: #{tpu_custom_call.1} parent=43 // pred_check_branch
          %292 = sbr.rel (%p290) target = $region52
        $region51: #{tpu_custom_call.1} parent=43 // pred_region
          %293 = dma.done %s286, 128
        $region52: #{tpu_custom_call.1} parent=43 // pred_fallthru
          _
        // Predicated region
        $region53: #{tpu_custom_call.1} parent=43 // pred_check
          %p294 = pneg %p120
        $region54: #{tpu_custom_call.1} parent=43 // pred_check_branch
          %296 = sbr.rel (%p294) target = $region56
        $region55: #{tpu_custom_call.1} parent=43 // pred_region
          %297 = dma.done [#allocation6], 256
        $region56: #{tpu_custom_call.1} parent=43 // pred_fallthru
          _
        %s298 = sand.u32 %s34, 1
        %s299 = scalar_lea.sflag [#allocation3], %s298
        %s300 = sand.u32 %s34, 1
        %s301 = smul.addr %s300, 8
        %s302 = scalar_lea.vmem [#allocation2], %s301
        %p303 = pneg %p47
        %p304 = pneg %p44
        %s305 = sand.u32 %s26, 1
        %s306 = scalar_lea.sflag [#allocation6], %s305
        %s307 = sand.u32 %s60, 1
        %s308 = smul.addr %s307, 8
        %s309 = scalar_lea.vmem [#allocation5], %s308
        %p310 = pneg %p73
        %p311 = pneg %p70
        %p312 = scmp.lt.s32.totalorder %s26, 1
        %s313 = scalar_select %p312, %s26, 1
        %s314 = smul.addr %s313, 8
        %s315 = scalar_lea.vmem %s2, %s314
        %p316 = pneg %p99
        %p317 = pneg %p96
        %p318 = pneg %p120
        %p319 = pneg %p117
        %p320 = pneg %p141
        %p321 = pneg %p138
        %p322 = pneg %p162
        %p323 = pneg %p159
        %p324 = pneg %p188
        %p325 = pneg %p185
        %s326 = sand.u32 %s175, 1
        %s327 = scalar_lea.sflag [#allocation4], %s326
        %s328 = sand.u32 %s175, 1
        %s329 = scalar_lea.vmem [#allocation8], %s328
        %p330 = scmp.lt.s32.totalorder %s26, 1
        %s331 = scalar_select %p330, %s26, 1
        %s332 = smul.addr %s331, 8
        %s333 = scalar_lea.vmem %s2, %s332
        %v334 = vld [vmem:[%s280] sm:$0xff]
        %v335 = vld [vmem:[%s333] sm:$0xff]
        %v336 = vld [vmem:[#allocation7] sm:$0xff]
        %v337 = vld [vmem:[#allocation7 + $0x8] sm:$0xff]
        %vm338 = vcmask 130048
        %v340 = vsel %vm338, %v334, 0
        %342 = vmatprep.subr.mxu0 0.0
        %343 = vmatpush1.msra.mxu0 %v336
        %344 = vmatprep.subr.mxu0 0.0
        %345 = vmatpush1.msra.mxu0 %v337
        %346 = vmatprep.subr.mxu0 0.0
        %347 = vmatpush1.msra.mxu0 0.0
        %348 = vmatprep.subr.mxu0 0.0
        %349 = vmatpush1.msra.mxu0 0.0
        %350 = vmatprep.subr.mxu0 0.0
        %351 = vmatpush1.msra.mxu0 0.0
        %352 = vmatprep.subr.mxu0 0.0
        %353 = vmatpush1.msra.mxu0 0.0
        %354 = vmatprep.subr.mxu0 0.0
        %355 = vmatpush1.msra.mxu0 0.0
        %356 = vmatprep.subr.mxu0 0.0
        %357 = vmatpush1.msra.mxu0 0.0
        %358 = vmatprep.subr.mxu0 0.0
        %359 = vmatpush1.msra.mxu0 0.0
        %360 = vmatprep.subr.mxu0 0.0
        %361 = vmatpush1.msra.mxu0 0.0
        %362 = vmatprep.subr.mxu0 0.0
        %363 = vmatpush1.msra.mxu0 0.0
        %364 = vmatprep.subr.mxu0 0.0
        %365 = vmatpush1.msra.mxu0 0.0
        %366 = vmatprep.subr.mxu0 0.0
        %367 = vmatpush1.msra.mxu0 0.0
        %368 = vmatprep.subr.mxu0 0.0
        %369 = vmatpush1.msra.mxu0 0.0
        %370 = vmatprep.subr.mxu0 0.0
        %371 = vmatpush1.msra.mxu0 0.0
        %372 = vmatprep.subr.mxu0 0.0
        %373 = vmatpush1.msra.mxu0 0.0
        %374 = vmatprep.subr.mxu0 0.0
        %375 = vmatpush1.msra.mxu0 0.0
        %376 = vmatprep.subr.mxu0 0.0
        %377 = vmatpush1.msra.mxu0 0.0
        %378 = vmatprep.subr.mxu0 0.0
        %379 = vmatpush1.msra.mxu0 0.0
        %380 = vmatprep.subr.mxu0 0.0
        %381 = vmatpush1.msra.mxu0 0.0
        %382 = vmatprep.subr.mxu0 0.0
        %383 = vmatpush1.msra.mxu0 0.0
        %384 = vmatprep.subr.mxu0 0.0
        %385 = vmatpush1.msra.mxu0 0.0
        %386 = vmatprep.subr.mxu0 0.0
        %387 = vmatpush1.msra.mxu0 0.0
        %388 = vmatprep.subr.mxu0 0.0
        %389 = vmatpush1.msra.mxu0 0.0
        %390 = vmatprep.subr.mxu0 0.0
        %391 = vmatpush1.msra.mxu0 0.0
        %392 = vmatprep.subr.mxu0 0.0
        %393 = vmatpush1.msra.mxu0 0.0
        %394 = vmatprep.subr.mxu0 0.0
        %395 = vmatpush1.msra.mxu0 0.0
        %396 = vmatprep.subr.mxu0 0.0
        %397 = vmatpush1.msra.mxu0 0.0
        %398 = vmatprep.subr.mxu0 0.0
        %399 = vmatpush1.msra.mxu0 0.0
        %400 = vmatprep.subr.mxu0 0.0
        %401 = vmatpush1.msra.mxu0 0.0
        %402 = vmatprep.subr.mxu0 0.0
        %403 = vmatpush1.msra.mxu0 0.0
        %404 = vmatprep.subr.mxu0 0.0
        %405 = vmatpush1.msra.mxu0 0.0
        %406 = vmatprep.mubr.f32.mxu0 0.0
        %407 = vmatmul.mubr.f32.gmra.mrb[0].mxu0 %v340
        %v408 = vpop.f32.mrb[0].mxu0
        %v409 = vadd.f32 0.0, %v408
        %v410 = vpop.f32.mrb[0].mxu0
        %411 = vdwg.mxu0
        %v412 = vld [vmem:[%s289] sm:$0xff]
        %414 = vset.pattern.permute.xlu0 0
        %415 = vperm.xlu0 %414, %v412
        %v416 = vpop.permute.xlu0 %415
        %v418 = vlaneseq
        %v419 = vshrl.u32 %v418, 7
        %v420 = vsub.s32 0, %v419
        %v421 = vrot.slane %v409, %v420
        %v422 = vmul.f32 %v416, %v421
        %423 = vset.pattern.permute.xlu0 1
        %424 = vperm.xlu0 %423, %v412
        %v425 = vpop.permute.xlu0 %424
        %v427 = vlaneseq
        %v428 = vshrl.u32 %v427, 7
        %v429 = vsub.s32 1, %v428
        %v430 = vrot.slane %v409, %v429
        %v431 = vmul.f32 %v425, %v430
        %v432 = vadd.f32 %v422, %v431
        %433 = vset.pattern.permute.xlu0 2
        %434 = vperm.xlu0 %433, %v412
        %v435 = vpop.permute.xlu0 %434
        %v437 = vlaneseq
        %v438 = vshrl.u32 %v437, 7
        %v439 = vsub.s32 2, %v438
        %v440 = vrot.slane %v409, %v439
        %v441 = vmul.f32 %v435, %v440
        %v442 = vadd.f32 %v432, %v441
        %443 = vset.pattern.permute.xlu0 3
        %444 = vperm.xlu0 %443, %v412
        %v445 = vpop.permute.xlu0 %444
        %v447 = vlaneseq
        %v448 = vshrl.u32 %v447, 7
        %v449 = vsub.s32 3, %v448
        %v450 = vrot.slane %v409, %v449
        %v451 = vmul.f32 %v445, %v450
        %v452 = vadd.f32 %v442, %v451
        %453 = vset.pattern.permute.xlu0 4
        %454 = vperm.xlu0 %453, %v412
        %v455 = vpop.permute.xlu0 %454
        %v457 = vlaneseq
        %v458 = vshrl.u32 %v457, 7
        %v459 = vsub.s32 4, %v458
        %v460 = vrot.slane %v409, %v459
        %v461 = vmul.f32 %v455, %v460
        %v462 = vadd.f32 %v452, %v461
        %463 = vset.pattern.permute.xlu0 5
        %464 = vperm.xlu0 %463, %v412
        %v465 = vpop.permute.xlu0 %464
        %v467 = vlaneseq
        %v468 = vshrl.u32 %v467, 7
        %v469 = vsub.s32 5, %v468
        %v470 = vrot.slane %v409, %v469
        %v471 = vmul.f32 %v465, %v470
        %v472 = vadd.f32 %v462, %v471
        %473 = vset.pattern.permute.xlu0 6
        %474 = vperm.xlu0 %473, %v412
        %v475 = vpop.permute.xlu0 %474
        %v477 = vlaneseq
        %v478 = vshrl.u32 %v477, 7
        %v479 = vsub.s32 6, %v478
        %v480 = vrot.slane %v409, %v479
        %v481 = vmul.f32 %v475, %v480
        %v482 = vadd.f32 %v472, %v481
        %483 = vset.pattern.permute.xlu0 7
        %484 = vperm.xlu0 %483, %v412
        %v485 = vpop.permute.xlu0 %484
        %v487 = vlaneseq
        %v488 = vshrl.u32 %v487, 7
        %v489 = vsub.s32 7, %v488
        %v490 = vrot.slane %v409, %v489
        %v491 = vmul.f32 %v485, %v490
        %v492 = vadd.f32 %v482, %v491
        %v493 = vmax.f32 %v492, 0.0
        %495 = vset.pattern.permute.xlu0 0
        %496 = vperm.xlu0 %495, %v335
        %v497 = vpop.permute.xlu0 %496
        %v499 = vmul.f32 %v493, %v497
        %v500 = vld [vmem:[%s4] sm:$0xff]
        %v501 = vld [vmem:[%s4 + $0x8] sm:$0xff]
        %v502 = vld [vmem:[%s4 + $0x10] sm:$0xff]
        %v503 = vld [vmem:[%s4 + $0x18] sm:$0xff]
        %v504 = vld [vmem:[%s5] sm:$0x1]
        %v506 = vlaneseq
        %v507 = vshrl.u32 %v506, 7
        %v508 = vsub.s32 0, %v507
        %v509 = vrot.slane %v504, %v508
        %vm511 = vcmask 261120
        %v513 = vsel %vm511, %v499, 0
        %515 = vmatprep.subr.mxu0 0.0
        %516 = vmatpush1.msra.mxu0 %v500
        %517 = vmatprep.subr.mxu0 0.0
        %518 = vmatpush1.msra.mxu0 %v501
        %519 = vmatprep.subr.mxu0 0.0
        %520 = vmatpush1.msra.mxu0 %v502
        %521 = vmatprep.subr.mxu0 0.0
        %522 = vmatpush1.msra.mxu0 %v503
        %523 = vmatprep.subr.mxu0 0.0
        %524 = vmatpush1.msra.mxu0 0.0
        %525 = vmatprep.subr.mxu0 0.0
        %526 = vmatpush1.msra.mxu0 0.0
        %527 = vmatprep.subr.mxu0 0.0
        %528 = vmatpush1.msra.mxu0 0.0
        %529 = vmatprep.subr.mxu0 0.0
        %530 = vmatpush1.msra.mxu0 0.0
        %531 = vmatprep.subr.mxu0 0.0
        %532 = vmatpush1.msra.mxu0 0.0
        %533 = vmatprep.subr.mxu0 0.0
        %534 = vmatpush1.msra.mxu0 0.0
        %535 = vmatprep.subr.mxu0 0.0
        %536 = vmatpush1.msra.mxu0 0.0
        %537 = vmatprep.subr.mxu0 0.0
        %538 = vmatpush1.msra.mxu0 0.0
        %539 = vmatprep.subr.mxu0 0.0
        %540 = vmatpush1.msra.mxu0 0.0
        %541 = vmatprep.subr.mxu0 0.0
        %542 = vmatpush1.msra.mxu0 0.0
        %543 = vmatprep.subr.mxu0 0.0
        %544 = vmatpush1.msra.mxu0 0.0
        %545 = vmatprep.subr.mxu0 0.0
        %546 = vmatpush1.msra.mxu0 0.0
        %547 = vmatprep.subr.mxu0 0.0
        %548 = vmatpush1.msra.mxu0 0.0
        %549 = vmatprep.subr.mxu0 0.0
        %550 = vmatpush1.msra.mxu0 0.0
        %551 = vmatprep.subr.mxu0 0.0
        %552 = vmatpush1.msra.mxu0 0.0
        %553 = vmatprep.subr.mxu0 0.0
        %554 = vmatpush1.msra.mxu0 0.0
        %555 = vmatprep.subr.mxu0 0.0
        %556 = vmatpush1.msra.mxu0 0.0
        %557 = vmatprep.subr.mxu0 0.0
        %558 = vmatpush1.msra.mxu0 0.0
        %559 = vmatprep.subr.mxu0 0.0
        %560 = vmatpush1.msra.mxu0 0.0
        %561 = vmatprep.subr.mxu0 0.0
        %562 = vmatpush1.msra.mxu0 0.0
        %563 = vmatprep.subr.mxu0 0.0
        %564 = vmatpush1.msra.mxu0 0.0
        %565 = vmatprep.subr.mxu0 0.0
        %566 = vmatpush1.msra.mxu0 0.0
        %567 = vmatprep.subr.mxu0 0.0
        %568 = vmatpush1.msra.mxu0 0.0
        %569 = vmatprep.subr.mxu0 0.0
        %570 = vmatpush1.msra.mxu0 0.0
        %571 = vmatprep.subr.mxu0 0.0
        %572 = vmatpush1.msra.mxu0 0.0
        %573 = vmatprep.subr.mxu0 0.0
        %574 = vmatpush1.msra.mxu0 0.0
        %575 = vmatprep.subr.mxu0 0.0
        %576 = vmatpush1.msra.mxu0 0.0
        %577 = vmatprep.subr.mxu0 0.0
        %578 = vmatpush1.msra.mxu0 0.0
        %579 = vmatprep.mubr.f32.mxu0 0.0
        %580 = vmatmul.mubr.f32.gmra.mrb[0].mxu0 %v513
        %v581 = vpop.f32.mrb[0].mxu0
        %v582 = vadd.f32 %v509, %v581
        %v583 = vpop.f32.mrb[0].mxu0
        %584 = vdwg.mxu0
        %v585 = vxor.u32 %v582, 2147483648
        %v586 = vmul.f32 %v585, 1.442695
        %v587 = vpow.pop %v586
        %v588 = vadd.f32 %v587, 1.0
        %v589 = vrcp.pop %v588
        %v590 = vmul.f32 1.0, %v589
        %v591 = vmax.f32 %v582, 0.0
        %593 = vset.pattern.permute.xlu0 32
        %594 = vperm.xlu0 %593, %v590
        %v595 = vpop.permute.xlu0 %594
        %v597 = vmul.f32 %v595, %v591
        %v598 = vmul.f32 %v597, %v497
        %v599 = vsel %vm511, %v598, 0.0
        %v600 = vrot.slane %v599, 4
        %v601 = vadd.f32 %v599, %v600
        %v602 = vrot.slane %v601, 2
        %v603 = vadd.f32 %v601, %v602
        %v604 = vrot.slane %v603, 1
        %v605 = vadd.f32 %v603, %v604
        %v606 = vsel %vm511, %v598, -inf
        %v607 = vrot.slane %v606, 4
        %v608 = vmax.f32 %v606, %v607
        %v609 = vrot.slane %v608, 2
        %v610 = vmax.f32 %v608, %v609
        %v611 = vrot.slane %v610, 1
        %v612 = vmax.f32 %v610, %v611
        %v613 = vmul.f32 %v605, %v612
        %vm614 = vcmask 253952
        %615 = vst.msk [vmem:[%s329] sm:$0x1] %vm614, %v613
        %s616 = sand.u32 %s175, 1
        %s617 = scalar_lea.sflag [#allocation4], %s616
        %s618 = sand.u32 %s175, 1
        %s619 = scalar_lea.vmem [#allocation8], %s618
        // Predicated region
        $region57: #{tpu_custom_call.1} parent=43 // pred_check
          %p620 = pneg %p185
        $region58: #{tpu_custom_call.1} parent=43 // pred_check_branch
          %622 = sbr.rel (%p620) target = $region60
        $region59: #{tpu_custom_call.1} parent=43 // pred_region
          %s624 = ssub.s32 16, 16
          %625 = vsyncadd %s617, %s624
          %s626 = smul.addr %s26, 16
          %s627 = scalar_lea.hbm %s6, %s626
          %s629 = sshll.u32 %s619, 4
          %s630 = int_to_ptr.vmem [resolvable:$true] %s629
          %632 = dma.vmem_to_hbm [thread:$0]  %s630, 16, %s627, %s617
        $region60: #{tpu_custom_call.1} parent=43 // pred_fallthru
          _
      $region44: #{tpu_custom_call.1} parent=5 // pred_fallthru
        _
      %p633 = scmp.le.s32.totalorder 2, %s21
      // Predicated region
      $region61: #{tpu_custom_call.1} parent=5 // pred_check
        %p634 = pneg %p633
      $region62: #{tpu_custom_call.1} parent=5 // pred_check_branch
        %636 = sbr.rel (%p634) target = $region64
      $region63: #{tpu_custom_call.1} parent=5 // pred_region
        %s637 = ssub.s32 %s21, 2
        // Predicated region
        $region65: #{tpu_custom_call.1} parent=63 // pred_check
          %p638 = pneg %p191
        $region66: #{tpu_custom_call.1} parent=63 // pred_check_branch
          %640 = sbr.rel (%p638) target = $region68
        $region67: #{tpu_custom_call.1} parent=63 // pred_region
          %s641 = sand.u32 %s176, 1
          %s642 = scalar_lea.sflag [#allocation4], %s641
          %s643 = sand.u32 %s176, 1
          %s644 = scalar_lea.vmem [#allocation8], %s643
          %645 = dma.done %s642, 16
        $region68: #{tpu_custom_call.1} parent=63 // pred_fallthru
          _
      $region64: #{tpu_custom_call.1} parent=5 // pred_fallthru
        _
    $region6: #{tpu_custom_call.1} parent=1 // loop_footer
      %s25 = sadd.s32 1, %s21
    $region7: #{tpu_custom_call.1} parent=1 // loop_footer_branch
      %20 = sbr.rel target = $region3
    $region8: #{tpu_custom_call.1} parent=1 // loop_exit
      _
    %646 = vsyncpa [#allocation3], 1
    %s647 = scalar_lea.sflag [#allocation3], 1
    %648 = vsyncpa %s647, 1
    %649 = vsyncpa [#allocation6], 1
    %s650 = scalar_lea.sflag [#allocation6], 1
    %651 = vsyncpa %s650, 1
    %652 = vsyncpa [#allocation4], 1
    %s653 = scalar_lea.sflag [#allocation4], 1
    %654 = vsyncpa %s653, 1

</llo_original>
